<compile_context>
chip_gen: v7x
topology: tpu7x:2x2x1
jax: 0.10.0
libtpu: 0.0.40
codegen_flags: <defaults>
</compile_context>

<pallas_src>
import functools

import jax
import jax.numpy as jnp
from jax import lax
from jax.experimental import pallas as pl
from jax.experimental.pallas import tpu as pltpu

hidden_channels = 128
num_hidden_layers = 1
out_channels = 64

# Safe on v7x (64 MiB physical VMEM) while leaving headroom on v5e/v6e (128 MiB).
_VMEM_LIMIT = 48 * 1024 * 1024
# XW is kept VMEM-resident during aggregation only below this footprint
# (2 pipeline buffers x bf16), re-derived conservatively for v7x's 64 MiB.
_XW_RESIDENT_BYTES = 16 * 1024 * 1024


# ------------------------------ helpers ------------------------------------

def _round_up(x, m):
    return ((x + m - 1) // m) * m


def _choose_node_tile(n, max_tile=1024, min_row_blocks=2):
    """Pick the aggregation tile FIRST, then pad N up to a multiple of it.

    Avoids the old divisibility trap (odd multiples of 128 collapsing to a
    128 tile) and keeps >= min_row_blocks row blocks on the 'parallel' axis
    so both v7x TensorCores get work.
    """
    n128 = _round_up(max(n, 1), 128)
    for t in (1024, 512, 256, 128):
        if t <= max_tile and t <= n128 and _round_up(n, t) // t >= min_row_blocks:
            return t
    return 128


def _divisor_tile(n_pad, max_tile=2048):
    """Largest row tile <= max_tile that divides n_pad (n_pad % 128 == 0)."""
    if n_pad <= max_tile:
        return n_pad
    t = max_tile
    while t > 128 and n_pad % t:
        t //= 2
    return t


def _pad2d(a, rows, cols, dtype):
    out = jnp.zeros((rows, cols), jnp.float32).at[: a.shape[0], : a.shape[1]].set(a)
    return out.astype(dtype)


# ----------------------------- Pallas kernels ------------------------------

def _xw_kernel(x_ref, w_ref, dis_ref, out_ref, *, apply_relu):
    """out = d_inv_sqrt[row] * (relu?(x) @ W)   (bf16 out, f32 accumulation)."""
    x = x_ref[...]
    if apply_relu:
        x = jnp.maximum(x, 0.0)
    # TODO(synk): F.dropout(p=0.2) is identity here (eval mode).
    xw = jnp.dot(x.astype(jnp.bfloat16), w_ref[...],
                 preferred_element_type=jnp.float32)
    # Fold D^{-1/2} of the source node into the XW rows, in f32.
    out_ref[...] = (xw * dis_ref[...]).astype(out_ref.dtype)


def xw_matmul(x, w, dis, tile_m, *, apply_relu):
    n_pad, c_in_pad = x.shape
    c_out_pad = w.shape[1]
    kernel = functools.partial(_xw_kernel, apply_relu=apply_relu)
    return pl.pallas_call(
        kernel,
        out_shape=jax.ShapeDtypeStruct((n_pad, c_out_pad), jnp.bfloat16),
        grid=(n_pad // tile_m,),
        in_specs=[
            pl.BlockSpec((tile_m, c_in_pad), lambda i: (i, 0)),
            pl.BlockSpec((c_in_pad, c_out_pad), lambda i: (0, 0)),
            pl.BlockSpec((tile_m, 1), lambda i: (i, 0)),
        ],
        out_specs=pl.BlockSpec((tile_m, c_out_pad), lambda i: (i, 0)),
        compiler_params=pltpu.CompilerParams(
            dimension_semantics=("parallel",),
            vmem_limit_bytes=_VMEM_LIMIT),
    )(x, w, dis)


def _agg_kernel(a_ref, xw_ref, dis_ref, b_ref, out_ref, acc_ref,
                *, tile_k, xw_resident):
    """Tiled out = d_inv_sqrt[row] * (A01 @ XW) + b with K-axis f32 accumulator."""
    k = pl.program_id(1)

    @pl.when(k == 0)
    def _():
        acc_ref[...] = jnp.zeros_like(acc_ref)

    # A is exact 0/1 stored as int8; upcast to bf16 in-kernel (free VPU slack
    # under the HBM-bandwidth-bound A stream) so the dot uses the bf16 MXU.
    a = a_ref[...].astype(jnp.bfloat16)
    if xw_resident:
        start = pl.multiple_of(k * tile_k, tile_k)
        xw = xw_ref[pl.ds(start, tile_k), :]      # XW stays VMEM-resident
    else:
        xw = xw_ref[...]
    acc_ref[...] += jnp.dot(a, xw, preferred_element_type=jnp.float32)

    @pl.when(k == pl.num_programs(1) - 1)
    def _():
        # Fold D^{-1/2} of the target node (f32) and add the bias.
        out_ref[...] = (acc_ref[...] * dis_ref[...] + b_ref[...]).astype(out_ref.dtype)


def aggregate(a01, xw, dis, b, tile, out_dtype):
    n_pad = a01.shape[0]
    c_out_pad = xw.shape[1]
    xw_resident = (2 * n_pad * c_out_pad * 2) <= _XW_RESIDENT_BYTES
    if xw_resident:
        xw_spec = pl.BlockSpec((n_pad, c_out_pad), lambda i, k: (0, 0))
    else:
        xw_spec = pl.BlockSpec((tile, c_out_pad), lambda i, k: (k, 0))
    kernel = functools.partial(_agg_kernel, tile_k=tile, xw_resident=xw_resident)
    return pl.pallas_call(
        kernel,
        out_shape=jax.ShapeDtypeStruct((n_pad, c_out_pad), out_dtype),
        grid=(n_pad // tile, n_pad // tile),
        in_specs=[
            pl.BlockSpec((tile, tile), lambda i, k: (i, k)),      # int8 A tile
            xw_spec,                                              # XW (resident)
            pl.BlockSpec((tile, 1), lambda i, k: (i, 0)),         # D^-1/2 rows
            pl.BlockSpec((1, c_out_pad), lambda i, k: (0, 0)),    # bias
        ],
        out_specs=pl.BlockSpec((tile, c_out_pad), lambda i, k: (i, 0)),
        scratch_shapes=[pltpu.VMEM((tile, c_out_pad), jnp.float32)],
        compiler_params=pltpu.CompilerParams(
            dimension_semantics=("parallel", "arbitrary"),
            vmem_limit_bytes=_VMEM_LIMIT),
    )(a01, xw, dis, b)


def _decode_kernel(row_ref, col_ref, z_ref, out_ref):
    """scores[e] = sum_c z[row[e], c] * z[col[e], c].

    z is VMEM-resident; the gather is done in-kernel with exact 0/1 one-hot
    matmuls (no z.T / jnp.take HBM glue in XLA).
    """
    te = row_ref.shape[0]
    n_pad = z_ref.shape[0]
    z = z_ref[...]
    node_iota = lax.broadcasted_iota(jnp.int32, (te, n_pad), 1)
    oh_r = (row_ref[...] == node_iota).astype(jnp.float32)   # (te, n_pad) exact 0/1
    oh_c = (col_ref[...] == node_iota).astype(jnp.float32)
    zr = jnp.dot(oh_r, z, preferred_element_type=jnp.float32)  # exact row gather
    zc = jnp.dot(oh_c, z, preferred_element_type=jnp.float32)
    out_ref[...] = jnp.sum(zr * zc, axis=1, keepdims=True)


def decode(z_pad, edge_index):
    row, col = edge_index[0], edge_index[1]
    e = row.shape[0]
    te = min(512, _round_up(e, 128))
    e_pad = _round_up(e, te)
    row_p = jnp.zeros((e_pad, 1), jnp.int32).at[:e, 0].set(row)
    col_p = jnp.zeros((e_pad, 1), jnp.int32).at[:e, 0].set(col)
    n_pad, c_pad = z_pad.shape
    scores = pl.pallas_call(
        _decode_kernel,
        out_shape=jax.ShapeDtypeStruct((e_pad, 1), jnp.float32),
        grid=(e_pad // te,),
        in_specs=[
            pl.BlockSpec((te, 1), lambda i: (i, 0)),
            pl.BlockSpec((te, 1), lambda i: (i, 0)),
            pl.BlockSpec((n_pad, c_pad), lambda i: (0, 0)),   # z resident in VMEM
        ],
        out_specs=pl.BlockSpec((te, 1), lambda i: (i, 0)),
        compiler_params=pltpu.CompilerParams(
            dimension_semantics=("arbitrary",),
            vmem_limit_bytes=_VMEM_LIMIT),
    )(row_p, col_p, z_pad)
    return scores[:e, 0]


# ------------------------------- JAX glue -----------------------------------

def build_adjacency(edge_index, num_nodes, n_pad):
    """Exact 0/1 padded int8 adjacency A[target, source] with remaining
    self-loops, plus the f32 D^{-1/2} column vector (padded nodes -> 0).

    Built directly in the padded buffer: one scatter + an indexed diagonal
    update + a cast; degrees come from a cheap edge scatter (no N^2 row-sum,
    no separate pad/normalize passes).
    """
    row, col = edge_index[0], edge_index[1]                     # source -> target
    a = jnp.zeros((n_pad, n_pad), jnp.float32).at[col, row].add(1.0)
    ids = jnp.arange(n_pad)
    diag = a[ids, ids]
    # add_remaining_self_loops: only where no self-loop exists, real nodes only.
    need_loop = ((diag == 0.0) & (ids < num_nodes)).astype(jnp.float32)
    a = a.at[ids, ids].add(need_loop)
    deg = jnp.zeros((n_pad,), jnp.float32).at[col].add(1.0) + need_loop
    d_inv_sqrt = jnp.where(deg > 0.0, lax.rsqrt(jnp.maximum(deg, 1e-30)), 0.0)
    return a.astype(jnp.int8), d_inv_sqrt.reshape(n_pad, 1)


def glorot(key, shape):
    fan_in, fan_out = shape
    limit = jnp.sqrt(6.0 / (fan_in + fan_out))
    return jax.random.uniform(key, shape, jnp.float32, -limit, limit)


class GCNLinkPredictorPallas:
    def __init__(self, in_channels, hidden_channels, num_hidden_layers,
                 out_channels, key):
        dims = [(in_channels, hidden_channels)]
        dims += [(hidden_channels, hidden_channels)] * num_hidden_layers
        dims += [(hidden_channels, out_channels)]
        keys = jax.random.split(key, len(dims))
        self.dims = dims
        self.out_channels = out_channels
        # GCNConv default: glorot weights, zero bias. Weights stored padded+bf16.
        self.weights, self.biases = [], []
        for k, (ci, co) in zip(keys, dims):
            ci_p, co_p = _round_up(ci, 128), _round_up(co, 128)
            w = glorot(k, (ci, co))
            self.weights.append(_pad2d(w, ci_p, co_p, jnp.bfloat16))
            self.biases.append(jnp.zeros((1, co_p), jnp.float32))

    def encode(self, x, a01, dis, tile):
        n, c_in = x.shape
        n_pad = a01.shape[0]
        c_in_pad = _round_up(c_in, 128)
        z = _pad2d(x, n_pad, c_in_pad, jnp.float32)
        xw_tile = _divisor_tile(n_pad)        # decoupled from the aggregation tile
        n_layers = len(self.weights)
        for li, (w, b) in enumerate(zip(self.weights, self.biases)):
            # F.relu (layers > 0) fused into the XW kernel; dropout is identity.
            xw = xw_matmul(z, w, dis, xw_tile, apply_relu=(li > 0))
            out_dtype = jnp.float32 if li == n_layers - 1 else jnp.bfloat16
            z = aggregate(a01, xw, dis, b, tile, out_dtype)
        return z  # padded (n_pad, c_out_pad); padded rows/channels are exactly zero

    def __call__(self, x, pos_edge_index, neg_edge_index=None):
        n = x.shape[0]
        tile = _choose_node_tile(n)
        n_pad = _round_up(n, tile)
        # Build the 0/1 adjacency + normalization vector ONCE, reuse every layer.
        a01, dis = build_adjacency(pos_edge_index, n, n_pad)
        z = self.encode(x, a01, dis, tile)
        pos_score = decode(z, pos_edge_index)
        if neg_edge_index is not None:
            neg_score = decode(z, neg_edge_index)
            return pos_score, neg_score
        return pos_score


# --------------------------------- main --------------------------------------

if __name__ == "__main__":
    key = jax.random.PRNGKey(0)
    k_x, k_params = jax.random.split(key)

    num_nodes = 16
    in_channels = 16
    x = jax.random.normal(k_x, (num_nodes, in_channels), dtype=jnp.float32)

    # Deterministic small edge sets (source row, target row), shape (2, E).
    pos_edge_index = jnp.array(
        [[0, 1, 2, 3, 4, 5, 6, 7],
         [1, 2, 3, 4, 5, 6, 7, 8]], dtype=jnp.int32)
    neg_edge_index = jnp.array(
        [[0, 2, 4, 6, 8, 10, 12, 14],
         [9, 11, 13, 15, 1, 3, 5, 7]], dtype=jnp.int32)

    model = GCNLinkPredictorPallas(in_channels, hidden_channels,
                                   num_hidden_layers, out_channels, k_params)

    pos_score, neg_score = model(x, pos_edge_index, neg_edge_index)
    jax.block_until_ready((pos_score, neg_score))

    assert pos_score.shape == (pos_edge_index.shape[1],)
    assert neg_score.shape == (neg_edge_index.shape[1],)
    assert bool(jnp.all(jnp.isfinite(pos_score))) and bool(jnp.all(jnp.isfinite(neg_score)))
    print("KERNEL_OK")
</pallas_src>

<mosaic_0001>
module attributes {stable_mosaic.version = 11 : i64} {
  func.func @_xw_kernel(%arg0: i32, %arg1: memref<128x128xf32, #tpu.memory_space<vmem>>, %arg2: memref<128x128xbf16, #tpu.memory_space<vmem>>, %arg3: memref<128x1xf32, #tpu.memory_space<vmem>>, %arg4: memref<128x128xbf16, #tpu.memory_space<vmem>>) attributes {dimension_semantics = [#tpu.dimension_semantics<parallel>], iteration_bounds = array<i64: 1>, scalar_prefetch = 0 : i64, scratch_operands = 0 : i64, tpu.core_type = #tpu.core_type<tc>, window_params = [{transform_indices = @transform_0, window_bounds = array<i64: 128, 128>}, {pipeline_mode = #tpu.pipeline_mode<synchronous>, transform_indices = @transform_1, window_bounds = array<i64: 128, 128>}, {transform_indices = @transform_2, window_bounds = array<i64: 128, 1>}, {transform_indices = @transform_3, window_bounds = array<i64: 128, 128>}]} {
    %c0 = arith.constant 0 : index
    %c0_0 = arith.constant 0 : index
    %0 = vector.load %arg1[%c0, %c0_0] : memref<128x128xf32, #tpu.memory_space<vmem>>, vector<128x128xf32>
    %1 = arith.truncf %0 : vector<128x128xf32> to vector<128x128xbf16>
    %c0_1 = arith.constant 0 : index
    %c0_2 = arith.constant 0 : index
    %2 = vector.load %arg2[%c0_1, %c0_2] : memref<128x128xbf16, #tpu.memory_space<vmem>>, vector<128x128xbf16>
    %cst = arith.constant dense<0.000000e+00> : vector<128x128xf32>
    %3 = tpu.matmul %1, %2, %cst {dimension_numbers = #tpu.dot_dimension_numbers<[1], [0], [0], [1], [0, 0, 1, 1], [], []>} : vector<128x128xbf16>, vector<128x128xbf16>, vector<128x128xf32> -> vector<128x128xf32>
    %c0_3 = arith.constant 0 : index
    %c0_4 = arith.constant 0 : index
    %4 = vector.load %arg3[%c0_3, %c0_4] : memref<128x1xf32, #tpu.memory_space<vmem>>, vector<128x1xf32>
    %5 = vector.broadcast %4 : vector<128x1xf32> to vector<128x128xf32>
    %6 = arith.mulf %3, %5 : vector<128x128xf32>
    %7 = arith.truncf %6 : vector<128x128xf32> to vector<128x128xbf16>
    %c0_5 = arith.constant 0 : index
    %c0_6 = arith.constant 0 : index
    %8 = vector.load %arg4[%c0_5, %c0_6] : memref<128x128xbf16, #tpu.memory_space<vmem>>, vector<128x128xbf16>
    tpu.vector_store %arg4[%c0_5, %c0_6], %7 {strides = array<i32>} : memref<128x128xbf16, #tpu.memory_space<vmem>>, vector<128x128xbf16>,
    return
  }
  func.func @transform_0(%arg0: i32) -> (i32, i32) {
    %c0_i32 = arith.constant 0 : i32
    %c0_i32_0 = arith.constant 0 : i32
    return %arg0, %c0_i32 : i32, i32
  }
  func.func @transform_1(%arg0: i32) -> (i32, i32) {
    %c0_i32 = arith.constant 0 : i32
    %c0_i32_0 = arith.constant 0 : i32
    %c0_i32_1 = arith.constant 0 : i32
    return %c0_i32, %c0_i32_0 : i32, i32
  }
  func.func @transform_2(%arg0: i32) -> (i32, i32) {
    %c0_i32 = arith.constant 0 : i32
    %c0_i32_0 = arith.constant 0 : i32
    return %arg0, %c0_i32 : i32, i32
  }
  func.func @transform_3(%arg0: i32) -> (i32, i32) {
    %c0_i32 = arith.constant 0 : i32
    %c0_i32_0 = arith.constant 0 : i32
    return %arg0, %c0_i32 : i32, i32
  }
}

</mosaic_0001>

<llo_original>
// kernel: tpu_custom_call.1
$region0: #{tpu_custom_call.1}
  #allocation0 [shape = 'u32[]', space=smem, size = 0x4, offset = 0x4, fixed_abs, tag = 'smem constant byte address 0x4 - core index']
  #allocation1 [shape = 'u32[144,128]{1,0:T(1,128)}', space=vmem, size = 0x12000, scoped, tag = 'internal scratch']
  %s0 = inlined_call_operand.vmem [shape: f32[128,128], index: 0, kind: input, shape index: {}]
  %s1 = inlined_call_operand.hbm [shape: bf16[128,128], index: 1, kind: input, shape index: {}]
  %s2 = inlined_call_operand.vmem [shape: f32[128,1], index: 2, kind: input, shape index: {}]
  %s3 = inlined_call_operand.hbm [shape: bf16[128,128], index: 3, kind: output, shape index: {}]
  %s4 = sld [smem:[#allocation0]]
  $region26: #{tpu_custom_call.1} parent=0
    _
  %s6 = ssub.s32 1, %s4
  %s7 = scalar_select 0, %s6, %s4
  $region1: #{tpu_custom_call.1} parent=0
    #allocation2 [shape = 'u8[32768]{0}', space=vmem, size = 0x8000, scoped, tag = 'input window, operand 1, single buffered']
    #allocation3 [shape = 's32[1]{0}', space=sflag, size = 0x4, scoped, tag = 'scoped memory for tpu_custom_call.1']
    #allocation4 [shape = 's32[1]{0}', space=sflag, size = 0x4, scoped, tag = 'scoped memory for tpu_custom_call.1']
    #allocation5 [shape = 'u8[32768]{0}', space=vmem, size = 0x8000, scoped, tag = 'output window, operand 0, single buffered']
    %8 = vsyncpa [#allocation3], 0
    %9 = vsyncpa [#allocation4], 0
    // Predicated region
    $region2: #{tpu_custom_call.1} parent=1 // pred_check
      _
    $region3: #{tpu_custom_call.1} parent=1 // pred_check_branch
      %11 = sbr.rel (0) target = $region5
    $region4: #{tpu_custom_call.1} parent=1 // pred_region
      _
    $region5: #{tpu_custom_call.1} parent=1 // pred_fallthru
      _
    // Predicated region
    $region6: #{tpu_custom_call.1} parent=1 // pred_check
      _
    $region7: #{tpu_custom_call.1} parent=1 // pred_check_branch
      %13 = sbr.rel (0) target = $region9
    $region8: #{tpu_custom_call.1} parent=1 // pred_region
      %s15 = ssub.s32 1024, 1024
      %16 = vsyncadd [#allocation3], %s15
      %s17 = sshll.u32 [#allocation2], 4
      %s18 = int_to_ptr.vmem [resolvable:$true] %s17
      %23 = dma.hbm_to_vmem [thread:$0]  %s1, 1024, %s18, [#allocation3], 64, 64, 4
    $region9: #{tpu_custom_call.1} parent=1 // pred_fallthru
      _
    // Predicated region
    $region10: #{tpu_custom_call.1} parent=1 // pred_check
      _
    $region11: #{tpu_custom_call.1} parent=1 // pred_check_branch
      %25 = sbr.rel (0) target = $region13
    $region12: #{tpu_custom_call.1} parent=1 // pred_region
      _
    $region13: #{tpu_custom_call.1} parent=1 // pred_fallthru
      _
    // Predicated region
    $region14: #{tpu_custom_call.1} parent=1 // pred_check
      _
    $region15: #{tpu_custom_call.1} parent=1 // pred_check_branch
      %27 = sbr.rel (0) target = $region17
    $region16: #{tpu_custom_call.1} parent=1 // pred_region
      %28 = dma.done [#allocation3], 1024
    $region17: #{tpu_custom_call.1} parent=1 // pred_fallthru
      _
    %v30 = vld [vmem:[%s0] sm:$0xff]
    %v31 = vld [vmem:[%s0 + $0x8] sm:$0xff]
    %v32 = vld [vmem:[%s0 + $0x10] sm:$0xff]
    %v33 = vld [vmem:[%s0 + $0x18] sm:$0xff]
    %v34 = vld [vmem:[%s0 + $0x20] sm:$0xff]
    %v35 = vld [vmem:[%s0 + $0x28] sm:$0xff]
    %v36 = vld [vmem:[%s0 + $0x30] sm:$0xff]
    %v37 = vld [vmem:[%s0 + $0x38] sm:$0xff]
    %v38 = vld [vmem:[%s0 + $0x40] sm:$0xff]
    %v39 = vld [vmem:[%s0 + $0x48] sm:$0xff]
    %v40 = vld [vmem:[%s0 + $0x50] sm:$0xff]
    %v41 = vld [vmem:[%s0 + $0x58] sm:$0xff]
    %v42 = vld [vmem:[%s0 + $0x60] sm:$0xff]
    %v43 = vld [vmem:[%s0 + $0x68] sm:$0xff]
    %v44 = vld [vmem:[%s0 + $0x70] sm:$0xff]
    %v45 = vld [vmem:[%s0 + $0x78] sm:$0xff]
    %v46 = vpack.c.bf16 %v31, %v30
    %v47 = vpack.c.bf16 %v33, %v32
    %v48 = vpack.c.bf16 %v35, %v34
    %v49 = vpack.c.bf16 %v37, %v36
    %v50 = vpack.c.bf16 %v39, %v38
    %v51 = vpack.c.bf16 %v41, %v40
    %v52 = vpack.c.bf16 %v43, %v42
    %v53 = vpack.c.bf16 %v45, %v44
    %v54 = vld [vmem:[#allocation2] sm:$0xf]
    %v55 = vld [vmem:[#allocation2 + $0x4] sm:$0xf]
    %v56 = vld [vmem:[#allocation2 + $0x8] sm:$0xf]
    %v57 = vld [vmem:[#allocation2 + $0xc] sm:$0xf]
    %v58 = vld [vmem:[#allocation2 + $0x10] sm:$0xf]
    %v59 = vld [vmem:[#allocation2 + $0x14] sm:$0xf]
    %v60 = vld [vmem:[#allocation2 + $0x18] sm:$0xf]
    %v61 = vld [vmem:[#allocation2 + $0x1c] sm:$0xf]
    %v62 = vld [vmem:[#allocation2 + $0x20] sm:$0xf]
    %v63 = vld [vmem:[#allocation2 + $0x24] sm:$0xf]
    %v64 = vld [vmem:[#allocation2 + $0x28] sm:$0xf]
    %v65 = vld [vmem:[#allocation2 + $0x2c] sm:$0xf]
    %v66 = vld [vmem:[#allocation2 + $0x30] sm:$0xf]
    %v67 = vld [vmem:[#allocation2 + $0x34] sm:$0xf]
    %v68 = vld [vmem:[#allocation2 + $0x38] sm:$0xf]
    %v69 = vld [vmem:[#allocation2 + $0x3c] sm:$0xf]
    %v86 = vunpack.c.l.b16 %v54
    %v87 = vunpack.c.l.b16 %v55
    %v88 = vunpack.c.l.b16 %v56
    %v89 = vunpack.c.l.b16 %v57
    %v90 = vunpack.c.l.b16 %v58
    %v91 = vunpack.c.l.b16 %v59
    %v92 = vunpack.c.l.b16 %v60
    %v93 = vunpack.c.l.b16 %v61
    %v94 = vunpack.c.l.b16 %v62
    %v95 = vunpack.c.l.b16 %v63
    %v96 = vunpack.c.l.b16 %v64
    %v97 = vunpack.c.l.b16 %v65
    %v98 = vunpack.c.l.b16 %v66
    %v99 = vunpack.c.l.b16 %v67
    %v100 = vunpack.c.l.b16 %v68
    %v101 = vunpack.c.l.b16 %v69
    %v102 = vpack.c.b16 %v87, %v86
    %v103 = vpack.c.b16 %v89, %v88
    %v104 = vpack.c.b16 %v91, %v90
    %v105 = vpack.c.b16 %v93, %v92
    %v106 = vpack.c.b16 %v95, %v94
    %v107 = vpack.c.b16 %v97, %v96
    %v108 = vpack.c.b16 %v99, %v98
    %v109 = vpack.c.b16 %v101, %v100
    %118 = vmatprep.subr.bf16.mxu0 0
    %119 = vmatpush1.bf16.msra.mxu0 %v102
    %120 = vmatprep.subr.bf16.mxu0 0
    %121 = vmatpush1.bf16.msra.mxu0 %v103
    %122 = vmatprep.subr.bf16.mxu0 0
    %123 = vmatpush1.bf16.msra.mxu0 %v104
    %124 = vmatprep.subr.bf16.mxu0 0
    %125 = vmatpush1.bf16.msra.mxu0 %v105
    %126 = vmatprep.subr.bf16.mxu0 0
    %127 = vmatpush1.bf16.msra.mxu0 %v106
    %128 = vmatprep.subr.bf16.mxu0 0
    %129 = vmatpush1.bf16.msra.mxu0 %v107
    %130 = vmatprep.subr.bf16.mxu0 0
    %131 = vmatpush1.bf16.msra.mxu0 %v108
    %132 = vmatprep.subr.bf16.mxu0 0
    %133 = vmatpush1.bf16.msra.mxu0 %v109
    %134 = vmatprep.subr.bf16.mxu0 0
    %135 = vmatpush1.bf16.msra.mxu0 0
    %136 = vmatprep.subr.bf16.mxu0 0
    %137 = vmatpush1.bf16.msra.mxu0 0
    %138 = vmatprep.subr.bf16.mxu0 0
    %139 = vmatpush1.bf16.msra.mxu0 0
    %140 = vmatprep.subr.bf16.mxu0 0
    %141 = vmatpush1.bf16.msra.mxu0 0
    %142 = vmatprep.subr.bf16.mxu0 0
    %143 = vmatpush1.bf16.msra.mxu0 0
    %144 = vmatprep.subr.bf16.mxu0 0
    %145 = vmatpush1.bf16.msra.mxu0 0
    %146 = vmatprep.subr.bf16.mxu0 0
    %147 = vmatpush1.bf16.msra.mxu0 0
    %148 = vmatprep.subr.bf16.mxu0 0
    %149 = vmatpush1.bf16.msra.mxu0 0
    %150 = vmatprep.mubr.bf16.mxu0 0
    %151 = vmatmul.mubr.bf16.gmra.mrb[0].mxu0 %v46
    %v152 = vpop.f32.mrb[0].mxu0
    %v153 = vadd.f32 0.0, %v152
    %v154 = vpop.f32.mrb[0].mxu0
    %v155 = vpop.f32.mrb[0].mxu0
    %v156 = vadd.f32 0.0, %v155
    %v157 = vpop.f32.mrb[0].mxu0
    %158 = vmatprep.mubr.bf16.mxu0 0
    %159 = vmatmul.mubr.bf16.gmra.mrb[0].mxu0 %v47
    %v160 = vpop.f32.mrb[0].mxu0
    %v161 = vadd.f32 0.0, %v160
    %v162 = vpop.f32.mrb[0].mxu0
    %v163 = vpop.f32.mrb[0].mxu0
    %v164 = vadd.f32 0.0, %v163
    %v165 = vpop.f32.mrb[0].mxu0
    %166 = vmatprep.mubr.bf16.mxu0 0
    %167 = vmatmul.mubr.bf16.gmra.mrb[0].mxu0 %v48
    %v168 = vpop.f32.mrb[0].mxu0
    %v169 = vadd.f32 0.0, %v168
    %v170 = vpop.f32.mrb[0].mxu0
    %v171 = vpop.f32.mrb[0].mxu0
    %v172 = vadd.f32 0.0, %v171
    %v173 = vpop.f32.mrb[0].mxu0
    %174 = vmatprep.mubr.bf16.mxu0 0
    %175 = vmatmul.mubr.bf16.gmra.mrb[0].mxu0 %v49
    %v176 = vpop.f32.mrb[0].mxu0
    %v177 = vadd.f32 0.0, %v176
    %v178 = vpop.f32.mrb[0].mxu0
    %v179 = vpop.f32.mrb[0].mxu0
    %v180 = vadd.f32 0.0, %v179
    %v181 = vpop.f32.mrb[0].mxu0
    %182 = vmatprep.mubr.bf16.mxu0 0
    %183 = vmatmul.mubr.bf16.gmra.mrb[0].mxu0 %v50
    %v184 = vpop.f32.mrb[0].mxu0
    %v185 = vadd.f32 0.0, %v184
    %v186 = vpop.f32.mrb[0].mxu0
    %v187 = vpop.f32.mrb[0].mxu0
    %v188 = vadd.f32 0.0, %v187
    %v189 = vpop.f32.mrb[0].mxu0
    %190 = vmatprep.mubr.bf16.mxu0 0
    %191 = vmatmul.mubr.bf16.gmra.mrb[0].mxu0 %v51
    %v192 = vpop.f32.mrb[0].mxu0
    %v193 = vadd.f32 0.0, %v192
    %v194 = vpop.f32.mrb[0].mxu0
    %v195 = vpop.f32.mrb[0].mxu0
    %v196 = vadd.f32 0.0, %v195
    %v197 = vpop.f32.mrb[0].mxu0
    %198 = vmatprep.mubr.bf16.mxu0 0
    %199 = vmatmul.mubr.bf16.gmra.mrb[0].mxu0 %v52
    %v200 = vpop.f32.mrb[0].mxu0
    %v201 = vadd.f32 0.0, %v200
    %v202 = vpop.f32.mrb[0].mxu0
    %v203 = vpop.f32.mrb[0].mxu0
    %v204 = vadd.f32 0.0, %v203
    %v205 = vpop.f32.mrb[0].mxu0
    %206 = vmatprep.mubr.bf16.mxu0 0
    %207 = vmatmul.mubr.bf16.gmra.mrb[0].mxu0 %v53
    %v208 = vpop.f32.mrb[0].mxu0
    %v209 = vadd.f32 0.0, %v208
    %v210 = vpop.f32.mrb[0].mxu0
    %v211 = vpop.f32.mrb[0].mxu0
    %v212 = vadd.f32 0.0, %v211
    %v213 = vpop.f32.mrb[0].mxu0
    %214 = vdwg.mxu0
    %v215 = vld [vmem:[%s2] sm:$0xff]
    %v216 = vld [vmem:[%s2 + $0x8] sm:$0xff]
    %v217 = vld [vmem:[%s2 + $0x10] sm:$0xff]
    %v218 = vld [vmem:[%s2 + $0x18] sm:$0xff]
    %v219 = vld [vmem:[%s2 + $0x20] sm:$0xff]
    %v220 = vld [vmem:[%s2 + $0x28] sm:$0xff]
    %v221 = vld [vmem:[%s2 + $0x30] sm:$0xff]
    %v222 = vld [vmem:[%s2 + $0x38] sm:$0xff]
    %v223 = vld [vmem:[%s2 + $0x40] sm:$0xff]
    %v224 = vld [vmem:[%s2 + $0x48] sm:$0xff]
    %v225 = vld [vmem:[%s2 + $0x50] sm:$0xff]
    %v226 = vld [vmem:[%s2 + $0x58] sm:$0xff]
    %v227 = vld [vmem:[%s2 + $0x60] sm:$0xff]
    %v228 = vld [vmem:[%s2 + $0x68] sm:$0xff]
    %v229 = vld [vmem:[%s2 + $0x70] sm:$0xff]
    %v230 = vld [vmem:[%s2 + $0x78] sm:$0xff]
    %232 = vset.pattern.permute.xlu0 0
    %233 = vperm.xlu0 %232, %v215
    %v234 = vpop.permute.xlu0 %233
    %237 = vset.pattern.permute.xlu0 0
    %238 = vperm.xlu0 %237, %v216
    %v239 = vpop.permute.xlu0 %238
    %242 = vset.pattern.permute.xlu0 0
    %243 = vperm.xlu0 %242, %v217
    %v244 = vpop.permute.xlu0 %243
    %247 = vset.pattern.permute.xlu0 0
    %248 = vperm.xlu0 %247, %v218
    %v249 = vpop.permute.xlu0 %248
    %252 = vset.pattern.permute.xlu0 0
    %253 = vperm.xlu0 %252, %v219
    %v254 = vpop.permute.xlu0 %253
    %257 = vset.pattern.permute.xlu0 0
    %258 = vperm.xlu0 %257, %v220
    %v259 = vpop.permute.xlu0 %258
    %262 = vset.pattern.permute.xlu0 0
    %263 = vperm.xlu0 %262, %v221
    %v264 = vpop.permute.xlu0 %263
    %267 = vset.pattern.permute.xlu0 0
    %268 = vperm.xlu0 %267, %v222
    %v269 = vpop.permute.xlu0 %268
    %272 = vset.pattern.permute.xlu0 0
    %273 = vperm.xlu0 %272, %v223
    %v274 = vpop.permute.xlu0 %273
    %277 = vset.pattern.permute.xlu0 0
    %278 = vperm.xlu0 %277, %v224
    %v279 = vpop.permute.xlu0 %278
    %282 = vset.pattern.permute.xlu0 0
    %283 = vperm.xlu0 %282, %v225
    %v284 = vpop.permute.xlu0 %283
    %287 = vset.pattern.permute.xlu0 0
    %288 = vperm.xlu0 %287, %v226
    %v289 = vpop.permute.xlu0 %288
    %292 = vset.pattern.permute.xlu0 0
    %293 = vperm.xlu0 %292, %v227
    %v294 = vpop.permute.xlu0 %293
    %297 = vset.pattern.permute.xlu0 0
    %298 = vperm.xlu0 %297, %v228
    %v299 = vpop.permute.xlu0 %298
    %302 = vset.pattern.permute.xlu0 0
    %303 = vperm.xlu0 %302, %v229
    %v304 = vpop.permute.xlu0 %303
    %307 = vset.pattern.permute.xlu0 0
    %308 = vperm.xlu0 %307, %v230
    %v309 = vpop.permute.xlu0 %308
    %v311 = vmul.f32 %v153, %v234
    %v312 = vmul.f32 %v156, %v239
    %v313 = vmul.f32 %v161, %v244
    %v314 = vmul.f32 %v164, %v249
    %v315 = vmul.f32 %v169, %v254
    %v316 = vmul.f32 %v172, %v259
    %v317 = vmul.f32 %v177, %v264
    %v318 = vmul.f32 %v180, %v269
    %v319 = vmul.f32 %v185, %v274
    %v320 = vmul.f32 %v188, %v279
    %v321 = vmul.f32 %v193, %v284
    %v322 = vmul.f32 %v196, %v289
    %v323 = vmul.f32 %v201, %v294
    %v324 = vmul.f32 %v204, %v299
    %v325 = vmul.f32 %v209, %v304
    %v326 = vmul.f32 %v212, %v309
    %v327 = vpack.c.bf16 %v312, %v311
    %v328 = vpack.c.bf16 %v314, %v313
    %v329 = vpack.c.bf16 %v316, %v315
    %v330 = vpack.c.bf16 %v318, %v317
    %v331 = vpack.c.bf16 %v320, %v319
    %v332 = vpack.c.bf16 %v322, %v321
    %v333 = vpack.c.bf16 %v324, %v323
    %v334 = vpack.c.bf16 %v326, %v325
    %v343 = vunpack.c.l.b16 %v327
    %v344 = vunpack.c.h.b16 %v327
    %v345 = vunpack.c.l.b16 %v328
    %v346 = vunpack.c.h.b16 %v328
    %v347 = vunpack.c.l.b16 %v329
    %v348 = vunpack.c.h.b16 %v329
    %v349 = vunpack.c.l.b16 %v330
    %v350 = vunpack.c.h.b16 %v330
    %v351 = vunpack.c.l.b16 %v331
    %v352 = vunpack.c.h.b16 %v331
    %v353 = vunpack.c.l.b16 %v332
    %v354 = vunpack.c.h.b16 %v332
    %v355 = vunpack.c.l.b16 %v333
    %v356 = vunpack.c.h.b16 %v333
    %v357 = vunpack.c.l.b16 %v334
    %v358 = vunpack.c.h.b16 %v334
    %v359 = vpack.c.b16 %v343, %v343
    %v360 = vpack.c.b16 %v344, %v344
    %v361 = vpack.c.b16 %v345, %v345
    %v362 = vpack.c.b16 %v346, %v346
    %v363 = vpack.c.b16 %v347, %v347
    %v364 = vpack.c.b16 %v348, %v348
    %v365 = vpack.c.b16 %v349, %v349
    %v366 = vpack.c.b16 %v350, %v350
    %v367 = vpack.c.b16 %v351, %v351
    %v368 = vpack.c.b16 %v352, %v352
    %v369 = vpack.c.b16 %v353, %v353
    %v370 = vpack.c.b16 %v354, %v354
    %v371 = vpack.c.b16 %v355, %v355
    %v372 = vpack.c.b16 %v356, %v356
    %v373 = vpack.c.b16 %v357, %v357
    %v374 = vpack.c.b16 %v358, %v358
    %391 = vst [vmem:[#allocation5] sm:$0xf] %v359
    %392 = vst [vmem:[#allocation5 + $0x4] sm:$0xf] %v360
    %393 = vst [vmem:[#allocation5 + $0x8] sm:$0xf] %v361
    %394 = vst [vmem:[#allocation5 + $0xc] sm:$0xf] %v362
    %395 = vst [vmem:[#allocation5 + $0x10] sm:$0xf] %v363
    %396 = vst [vmem:[#allocation5 + $0x14] sm:$0xf] %v364
    %397 = vst [vmem:[#allocation5 + $0x18] sm:$0xf] %v365
    %398 = vst [vmem:[#allocation5 + $0x1c] sm:$0xf] %v366
    %399 = vst [vmem:[#allocation5 + $0x20] sm:$0xf] %v367
    %400 = vst [vmem:[#allocation5 + $0x24] sm:$0xf] %v368
    %401 = vst [vmem:[#allocation5 + $0x28] sm:$0xf] %v369
    %402 = vst [vmem:[#allocation5 + $0x2c] sm:$0xf] %v370
    %403 = vst [vmem:[#allocation5 + $0x30] sm:$0xf] %v371
    %404 = vst [vmem:[#allocation5 + $0x34] sm:$0xf] %v372
    %405 = vst [vmem:[#allocation5 + $0x38] sm:$0xf] %v373
    %406 = vst [vmem:[#allocation5 + $0x3c] sm:$0xf] %v374
    // Predicated region
    $region18: #{tpu_custom_call.1} parent=1 // pred_check
      _
    $region19: #{tpu_custom_call.1} parent=1 // pred_check_branch
      %408 = sbr.rel (0) target = $region21
    $region20: #{tpu_custom_call.1} parent=1 // pred_region
      %s410 = ssub.s32 1024, 1024
      %411 = vsyncadd [#allocation4], %s410
      %s412 = sshll.u32 [#allocation5], 4
      %s413 = int_to_ptr.vmem [resolvable:$true] %s412
      %418 = dma.vmem_to_hbm [thread:$0]  %s413, 1024, %s3, [#allocation4], 64, 64, 4
    $region21: #{tpu_custom_call.1} parent=1 // pred_fallthru
      _
    // Predicated region
    $region22: #{tpu_custom_call.1} parent=1 // pred_check
      _
    $region23: #{tpu_custom_call.1} parent=1 // pred_check_branch
      %420 = sbr.rel (0) target = $region25
    $region24: #{tpu_custom_call.1} parent=1 // pred_region
      %421 = dma.done [#allocation4], 1024
    $region25: #{tpu_custom_call.1} parent=1 // pred_fallthru
      _
    %422 = vsyncpa [#allocation3], 1
    %423 = vsyncpa [#allocation4], 1

</llo_original>
